<compile_context>
chip_gen: v7x
topology: tpu7x:2x2x1
jax: 0.10.0
libtpu: 0.0.40
codegen_flags: <defaults>
</compile_context>

<pallas_src>
import functools
import math

import jax
import jax.numpy as jnp
from jax.experimental import pallas as pl
from jax.experimental.pallas import tpu as pltpu


def _max_power(K):
    """Highest adjacency power actually used by the (buggy) torch diffusion concat."""
    if K <= 0:
        return 0
    return max(1, K - 1)


# ----------------------------- Pallas kernel ----------------------------------


def dcgru_cell_kernel(xT_ref, hT_ref, bd_ref,
                      wg_ref, bg_ref, wc_ref, bc_ref,
                      outT_ref, *, K, num_units, mxu_dtype):
    U = num_units
    R = xT_ref.shape[1]                    # lanes = Bt * N (multiple of 128)
    Pmax = _max_power(K)

    xT = xT_ref[...]                       # (U, R) f32
    hT = hT_ref[...]                       # (U, R) f32
    bd = bd_ref[0]                         # (R, 2R) mxu_dtype: [BD0^T | BD1^T]

    x_mx = xT.astype(mxu_dtype)

    def diffuse(y_mx):
        """Unique diffusion pieces of y per support:
        [[yA0, yA0^2, ...], [yA1, yA1^2, ...]] (powers 1..Pmax), (U,R) mxu_dtype."""
        if Pmax == 0:
            return [[], []]
        # One fused dot gives BOTH supports' first hop: (U,R)@(R,2R) -> (U,2R).
        both = jnp.dot(y_mx, bd, preferred_element_type=jnp.float32)
        per = [[both[:, :R].astype(mxu_dtype)],
               [both[:, R:].astype(mxu_dtype)]]
        for _ in range(2, Pmax + 1):       # higher powers only exist when K >= 3
            per[0].append(jnp.dot(per[0][-1], bd[:, :R],
                                  preferred_element_type=jnp.float32).astype(mxu_dtype))
            per[1].append(jnp.dot(per[1][-1], bd[:, R:],
                                  preferred_element_type=jnp.float32).astype(mxu_dtype))
        return per

    x_diff = diffuse(x_mx)                 # shared by gate and candidate gconvs

    def gconv(state_f32, w_ref, b_ref):
        s_mx = state_f32.astype(mxu_dtype)
        s_diff = diffuse(s_mx)
        # Deduplicated slab; all concatenation is on the sublane axis at multiples
        # of U (cheap vreg placement, no lane shuffles).
        blocks = [x_mx, s_mx]
        for s in range(2):
            for p in range(Pmax):
                blocks.append(x_diff[s][p])
                blocks.append(s_diff[s][p])
        slab = jnp.concatenate(blocks, axis=0)          # ((1+2*Pmax)*2U, R)
        # Single fused weight contraction (weights pre-folded in the wrapper).
        pre = jnp.dot(w_ref[...], slab, preferred_element_type=jnp.float32)
        return pre + b_ref[...]                         # (out, 1) lane broadcast

    gate = jax.nn.sigmoid(gconv(hT, wg_ref, bg_ref))    # (2U, R) f32
    rT = gate[:U, :]
    uT = gate[U:, :]
    cT = jnp.tanh(gconv(rT * hT, wc_ref, bc_ref))       # (U, R) f32
    outT_ref[...] = uT * hT + (1.0 - uT) * cT           # dense 128-lane store


# ----------------------------- wrapper -----------------------------------------


def fuse_dcgru_params(params, *, num_units, max_diffusion_step, mxu_dtype):
    """Fold the duplicated diffusion weight columns of the two nn.Linear layers of
    each gconv into one fused (out, (1+2*Pmax)*2U) matrix matching the kernel's
    deduplicated slab layout; fuse the biases (b0+b1).  Hoistable across RNN steps."""
    U, K = num_units, max_diffusion_step
    M = K + 1
    Pmax = _max_power(K)

    def power_of(m):                        # piece m carries A^power_of(m)
        return 0 if m == 0 else (1 if m == 1 else m - 1)

    def fuse_w(w0, w1):
        out = w0.shape[0]
        w0r = w0.reshape(out, 2 * U, M)     # torch column index = f*M + m
        w1r = w1.reshape(out, 2 * U, M)

        def pblock(wr, p):
            cols = [wr[:, :, m] for m in range(M) if power_of(m) == p]
            return functools.reduce(jnp.add, cols)      # (out, 2U)

        blocks = [pblock(w0r, 0) + pblock(w1r, 0)]      # shared x/state (power 0)
        for wr in (w0r, w1r):
            for p in range(1, Pmax + 1):
                blocks.append(pblock(wr, p))
        return jnp.concatenate(blocks, axis=1).astype(mxu_dtype)

    f32 = jnp.float32
    return {
        'wg': fuse_w(params['gconv_0_w'], params['gconv_1_w']),
        'bg': (params['gconv_0_b'] + params['gconv_1_b']).reshape(-1, 1).astype(f32),
        'wc': fuse_w(params['gconv_c_0_w'], params['gconv_c_1_w']),
        'bc': (params['gconv_c_0_b'] + params['gconv_c_1_b']).reshape(-1, 1).astype(f32),
    }


def dcgru_cell_pallas(inputs, hx, adj, params, *, num_nodes, num_units,
                      max_diffusion_step, block_batch=None,
                      mxu_dtype=jnp.float32):
    """inputs/hx: (B, N*U); adj: (B, N, N).  Returns (B, N*U) float32.

    mxu_dtype=float32 (default) reproduces PyTorch f32 numerics exactly;
    mxu_dtype=bfloat16 is the documented fast path (bf16 MXU operands and bf16
    support/weight DMA, f32 accumulation and f32 elementwise everywhere).

    For multi-step RNN use, hoist fuse_dcgru_params() and keep activations in the
    transposed (U, B*N) layout between time steps to avoid per-step HBM transposes.
    """
    f32 = jnp.float32
    B = inputs.shape[0]
    N, U, K = num_nodes, num_units, max_diffusion_step
    Pmax = _max_power(K)
    itemsize = jnp.dtype(mxu_dtype).itemsize

    x = inputs.reshape(B, N, U).astype(f32)
    h = hx.reshape(B, N, U).astype(f32)
    adj = adj.astype(f32)

    # ---- batch-block selection: smallest Bt with Bt*N a multiple of 128 lanes ----
    # Never fall back to Bt=B / G=1: that kills megacore sharding & pipelining and
    # makes the (R,2R) support tile scale as (B*N)^2 (blows v7x's 64 MiB VMEM).
    if block_batch is None:
        Bt = math.lcm(N, 128) // N
    else:
        Bt = block_batch
    Bp = -(-B // Bt) * Bt
    if Bp != B:
        pad = Bp - B
        x = jnp.pad(x, ((0, pad), (0, 0), (0, 0)))
        h = jnp.pad(h, ((0, pad), (0, 0), (0, 0)))
        adj = jnp.pad(adj, ((0, pad), (0, 0), (0, 0)))   # zero adj -> A = I (safe)
    G = Bp // Bt
    R = Bt * N
    # TODO(synk): if 2 (buffers) x R x 2R x itemsize exceeds ~24 MiB (very large N),
    # pass compact (G,Bt,N,N) supports and assemble the block-diagonal in VMEM scratch.

    # ---- hoisted random-walk normalization (column-sum d, matching torch) -------
    def random_walk(a):
        a = a + jnp.eye(N, dtype=f32)[None]
        d = jnp.sum(a, axis=1)
        d_inv = 1.0 / d
        d_inv = jnp.where(jnp.isinf(d_inv), jnp.zeros_like(d_inv), d_inv)
        return d_inv[:, :, None] * a                  # diag(d_inv) @ a
    A0 = random_walk(adj)
    A1 = random_walk(jnp.transpose(adj, (0, 2, 1)))

    # Block-diagonal transposed supports, lane-concatenated: BD[g] = [BD0^T | BD1^T].
    eye_bt = jnp.eye(Bt, dtype=f32)
    def block_diag_T(A):
        At = jnp.transpose(A, (0, 2, 1)).reshape(G, Bt, N, N)
        return jnp.einsum('gbij,bc->gbicj', At, eye_bt).reshape(G, R, R)
    BD = jnp.concatenate([block_diag_T(A0), block_diag_T(A1)],
                         axis=2).astype(mxu_dtype)       # (G, R, 2R)

    # ---- transposed, lane-dense activations: column index = b*N + n --------------
    xT = x.transpose(2, 0, 1).reshape(U, Bp * N)
    hT = h.transpose(2, 0, 1).reshape(U, Bp * N)

    fused = fuse_dcgru_params(params, num_units=U, max_diffusion_step=K,
                              mxu_dtype=mxu_dtype)
    wg, bg, wc, bc = fused['wg'], fused['bg'], fused['wc'], fused['bc']

    kernel = functools.partial(dcgru_cell_kernel, K=K, num_units=U,
                               mxu_dtype=mxu_dtype)

    def resident_spec(arr):                 # constant block index -> stays resident
        nd = arr.ndim
        return pl.BlockSpec(arr.shape, lambda g, _nd=nd: (0,) * _nd)

    # VMEM budget: double-buffered support tile + activations + resident weights.
    bd_tile = R * 2 * R * itemsize
    act_tile = U * R * 4
    w_bytes = (wg.size + wc.size) * itemsize + (bg.size + bc.size) * 4
    est = 2 * (bd_tile + 3 * act_tile) + w_bytes + (4 << 20)
    vmem_limit = int(min(60 << 20, max(32 << 20, 2 * est)))

    outT = pl.pallas_call(
        kernel,
        out_shape=jax.ShapeDtypeStruct((U, Bp * N), f32),
        grid_spec=pltpu.PrefetchScalarGridSpec(
            num_scalar_prefetch=0,
            grid=(G,),
            in_specs=[
                pl.BlockSpec((U, R), lambda g: (0, g)),            # xT
                pl.BlockSpec((U, R), lambda g: (0, g)),            # hT
                pl.BlockSpec((1, R, 2 * R), lambda g: (g, 0, 0)),  # [BD0^T | BD1^T]
                resident_spec(wg), resident_spec(bg),              # fused gate w/b
                resident_spec(wc), resident_spec(bc),              # fused cand w/b
            ],
            out_specs=pl.BlockSpec((U, R), lambda g: (0, g)),
        ),
        compiler_params=pltpu.CompilerParams(
            dimension_semantics=("parallel",),
            vmem_limit_bytes=vmem_limit),
    )(xT, hT, BD, wg, bg, wc, bc)

    out = outT.reshape(U, Bp, N).transpose(1, 2, 0)[:B]            # (B, N, U)
    return out.reshape(B, N * U)


# ---------------- pure-JAX reference (direct transcription of the torch code) --


def _random_walk0_ref(adj):
    B, N, _ = adj.shape
    adj = adj + jnp.eye(N, dtype=adj.dtype)[None]
    d = jnp.sum(adj, axis=1)
    d_inv = 1.0 / d
    d_inv = jnp.where(jnp.isinf(d_inv), jnp.zeros_like(d_inv), d_inv)
    d_mat_inv = jax.vmap(jnp.diag)(d_inv)
    return jnp.matmul(d_mat_inv, adj)


def dcgru_cell_reference(inputs, hx, adj, params, *,
                         num_nodes, num_units, max_diffusion_step):
    B = inputs.shape[0]
    N, U, K = num_nodes, num_units, max_diffusion_step

    def gconv(state, w0, b0, w1, b1, out_size):
        A0 = _random_walk0_ref(adj)
        A1 = _random_walk0_ref(jnp.transpose(adj, (0, 2, 1)))
        x_in = inputs.reshape(B, N, -1)
        st = state.reshape(B, N, -1)
        x = jnp.concatenate([x_in, st], axis=2)
        input_size = x.shape[2]
        x0 = x[None]
        x1 = x[None]
        if K > 0:
            x0_1 = jnp.matmul(A0, x0)
            x1_1 = jnp.matmul(A1, x1)
            x0 = jnp.concatenate([x0, x0_1], axis=0)
            x1 = jnp.concatenate([x1, x1_1], axis=0)
            for _ in range(2, K + 1):
                x0_2 = jnp.matmul(A0, x0_1)
                x1_2 = jnp.matmul(A1, x1_1)
                x0 = jnp.concatenate([x0, x0_1], axis=0)
                x1 = jnp.concatenate([x1, x1_1], axis=0)
                x0_1 = x0_2
                x1_1 = x1_2
        M = K + 1
        x0 = jnp.transpose(x0, (1, 2, 3, 0)).reshape(B * N, input_size * M)
        x1 = jnp.transpose(x1, (1, 2, 3, 0)).reshape(B * N, input_size * M)
        y = x0 @ w0.T + b0 + x1 @ w1.T + b1
        return y.reshape(B, N * out_size)

    value = jax.nn.sigmoid(gconv(hx, params['gconv_0_w'], params['gconv_0_b'],
                                 params['gconv_1_w'], params['gconv_1_b'], 2 * U))
    value = value.reshape(B, N, 2 * U)
    r = value[..., :U].reshape(B, N * U)
    u = value[..., U:].reshape(B, N * U)
    c = jnp.tanh(gconv(r * hx, params['gconv_c_0_w'], params['gconv_c_0_b'],
                       params['gconv_c_1_w'], params['gconv_c_1_b'], U))
    return u * hx + (1.0 - u) * c


# ---------------- deterministic parameter init (mirrors module __init__) -------


def init_params(key, num_units, max_diffusion_step):
    U, M = num_units, max_diffusion_step + 1
    in_dim = 2 * U * M

    def xavier(k, out_dim, fan_in):
        std = (2.0 / (fan_in + out_dim)) ** 0.5
        return std * jax.random.normal(k, (out_dim, fan_in), jnp.float32)

    k0, k1, k2, k3 = jax.random.split(key, 4)
    return {
        'gconv_0_w': xavier(k0, 2 * U, in_dim),
        'gconv_0_b': jnp.full((2 * U,), 0.1, jnp.float32),
        'gconv_1_w': xavier(k1, 2 * U, in_dim),
        'gconv_1_b': jnp.full((2 * U,), 0.1, jnp.float32),
        'gconv_c_0_w': xavier(k2, U, in_dim),
        'gconv_c_0_b': jnp.full((U,), 0.1, jnp.float32),
        'gconv_c_1_w': xavier(k3, U, in_dim),
        'gconv_c_1_b': jnp.full((U,), 0.1, jnp.float32),
    }


if __name__ == "__main__":
    # batch, num_nodes, num_units, max_diffusion_step
    # N=16 -> Bt=8 (R=Bt*N=128 lanes); B=32 -> grid G=4: even split over both v7x
    # TensorCores with >=2 steps per core so BD DMA overlaps MXU work.
    B, N, U, K = 32, 16, 32, 2

    key = jax.random.PRNGKey(0)
    kp, ki, kh, ka = jax.random.split(key, 4)
    params = init_params(kp, U, K)

    inputs = jax.random.normal(ki, (B, N * U), jnp.float32)
    hx = jax.random.normal(kh, (B, N * U), jnp.float32)
    adj = jax.nn.softmax(jax.random.normal(ka, (B, N, N), jnp.float32), axis=-1)

    ref = dcgru_cell_reference(inputs, hx, adj, params,
                               num_nodes=N, num_units=U, max_diffusion_step=K)

    # Exact-parity path (default): f32 MXU operands, tight tolerance.
    out_f32 = dcgru_cell_pallas(inputs, hx, adj, params,
                                num_nodes=N, num_units=U, max_diffusion_step=K)
    out_f32 = jax.block_until_ready(out_f32)
    assert out_f32.shape == (B, N * U)
    err32 = float(jnp.max(jnp.abs(out_f32 - ref)))
    assert jnp.allclose(out_f32, ref, rtol=2e-3, atol=2e-3), f"f32 max abs err {err32}"

    # Fast path (v5e/v6e/v7x): bf16 MXU operands + bf16 support/weight DMA,
    # f32 accumulation and f32 elementwise.  Checked with a relative-norm bound
    # (exact parity is proven by the f32 run above).
    out_bf16 = dcgru_cell_pallas(inputs, hx, adj, params,
                                 num_nodes=N, num_units=U, max_diffusion_step=K,
                                 mxu_dtype=jnp.bfloat16)
    out_bf16 = jax.block_until_ready(out_bf16)
    rel = float(jnp.linalg.norm(out_bf16 - ref) / jnp.linalg.norm(ref))
    assert rel < 3e-2, f"bf16 relative L2 error {rel}"

    print("KERNEL_OK")
</pallas_src>

<mosaic_0001>
module attributes {stable_mosaic.version = 11 : i64} {
  func.func @dcgru_cell_kernel(%arg0: i32, %arg1: memref<32x128xf32, #tpu.memory_space<vmem>>, %arg2: memref<32x128xf32, #tpu.memory_space<vmem>>, %arg3: memref<1x128x256xf32, #tpu.memory_space<vmem>>, %arg4: memref<64x192xf32, #tpu.memory_space<vmem>>, %arg5: memref<64x1xf32, #tpu.memory_space<vmem>>, %arg6: memref<32x192xf32, #tpu.memory_space<vmem>>, %arg7: memref<32x1xf32, #tpu.memory_space<vmem>>, %arg8: memref<32x128xf32, #tpu.memory_space<vmem>>) attributes {dimension_semantics = [#tpu.dimension_semantics<parallel>], iteration_bounds = array<i64: 4>, scalar_prefetch = 0 : i64, scratch_operands = 0 : i64, tpu.core_type = #tpu.core_type<tc>, window_params = [{transform_indices = @transform_0, window_bounds = array<i64: 32, 128>}, {transform_indices = @transform_1, window_bounds = array<i64: 32, 128>}, {transform_indices = @transform_2, window_bounds = array<i64: 1, 128, 256>}, {pipeline_mode = #tpu.pipeline_mode<synchronous>, transform_indices = @transform_3, window_bounds = array<i64: 64, 192>}, {pipeline_mode = #tpu.pipeline_mode<synchronous>, transform_indices = @transform_4, window_bounds = array<i64: 64, 1>}, {pipeline_mode = #tpu.pipeline_mode<synchronous>, transform_indices = @transform_5, window_bounds = array<i64: 32, 192>}, {pipeline_mode = #tpu.pipeline_mode<synchronous>, transform_indices = @transform_6, window_bounds = array<i64: 32, 1>}, {transform_indices = @transform_7, window_bounds = array<i64: 32, 128>}]} {
    %c0 = arith.constant 0 : index
    %c0_0 = arith.constant 0 : index
    %0 = vector.load %arg1[%c0, %c0_0] : memref<32x128xf32, #tpu.memory_space<vmem>>, vector<32x128xf32>
    %c0_1 = arith.constant 0 : index
    %c0_2 = arith.constant 0 : index
    %1 = vector.load %arg2[%c0_1, %c0_2] : memref<32x128xf32, #tpu.memory_space<vmem>>, vector<32x128xf32>
    %c0_3 = arith.constant 0 : index
    %c0_4 = arith.constant 0 : index
    %c0_5 = arith.constant 0 : index
    %2 = vector.load %arg3[%c0_3, %c0_4, %c0_5] : memref<1x128x256xf32, #tpu.memory_space<vmem>>, vector<1x128x256xf32>
    %3 = vector.shape_cast %2 : vector<1x128x256xf32> to vector<128x256xf32>
    %cst = arith.constant dense<0.000000e+00> : vector<32x256xf32>
    %4 = tpu.matmul %0, %3, %cst {dimension_numbers = #tpu.dot_dimension_numbers<[1], [0], [0], [1], [0, 0, 1, 1], [], []>} : vector<32x128xf32>, vector<128x256xf32>, vector<32x256xf32> -> vector<32x256xf32>
    %5 = vector.extract_strided_slice %4 {offsets = [0, 0], sizes = [32, 128], strides = [1, 1]} : vector<32x256xf32> to vector<32x128xf32>
    %6 = vector.extract_strided_slice %4 {offsets = [0, 128], sizes = [32, 128], strides = [1, 1]} : vector<32x256xf32> to vector<32x128xf32>
    %cst_6 = arith.constant dense<0.000000e+00> : vector<32x256xf32>
    %7 = tpu.matmul %1, %3, %cst_6 {dimension_numbers = #tpu.dot_dimension_numbers<[1], [0], [0], [1], [0, 0, 1, 1], [], []>} : vector<32x128xf32>, vector<128x256xf32>, vector<32x256xf32> -> vector<32x256xf32>
    %8 = vector.extract_strided_slice %7 {offsets = [0, 0], sizes = [32, 128], strides = [1, 1]} : vector<32x256xf32> to vector<32x128xf32>
    %9 = vector.extract_strided_slice %7 {offsets = [0, 128], sizes = [32, 128], strides = [1, 1]} : vector<32x256xf32> to vector<32x128xf32>
    %10 = tpu.concatenate %0, %1, %5, %8, %6, %9 in 0 : vector<32x128xf32>, vector<32x128xf32>, vector<32x128xf32>, vector<32x128xf32>, vector<32x128xf32>, vector<32x128xf32> -> vector<192x128xf32>
    %c0_7 = arith.constant 0 : index
    %c0_8 = arith.constant 0 : index
    %11 = vector.load %arg4[%c0_7, %c0_8] : memref<64x192xf32, #tpu.memory_space<vmem>>, vector<64x192xf32>
    %cst_9 = arith.constant dense<0.000000e+00> : vector<64x128xf32>
    %12 = tpu.matmul %11, %10, %cst_9 {dimension_numbers = #tpu.dot_dimension_numbers<[1], [0], [0], [1], [0, 0, 1, 1], [], []>} : vector<64x192xf32>, vector<192x128xf32>, vector<64x128xf32> -> vector<64x128xf32>
    %c0_10 = arith.constant 0 : index
    %c0_11 = arith.constant 0 : index
    %13 = vector.load %arg5[%c0_10, %c0_11] : memref<64x1xf32, #tpu.memory_space<vmem>>, vector<64x1xf32>
    %14 = vector.broadcast %13 : vector<64x1xf32> to vector<64x128xf32>
    %15 = arith.addf %12, %14 : vector<64x128xf32>
    %16 = arith.negf %15 : vector<64x128xf32>
    %17 = math.exp %16 : vector<64x128xf32>
    %cst_12 = arith.constant 1.000000e+00 : f32
    %18 = vector.broadcast %cst_12 : f32 to vector<64x128xf32>
    %19 = arith.addf %18, %17 : vector<64x128xf32>
    %20 = arith.divf %18, %19 : vector<64x128xf32>
    %21 = vector.extract_strided_slice %20 {offsets = [0, 0], sizes = [32, 128], strides = [1, 1]} : vector<64x128xf32> to vector<32x128xf32>
    %22 = vector.extract_strided_slice %20 {offsets = [32, 0], sizes = [32, 128], strides = [1, 1]} : vector<64x128xf32> to vector<32x128xf32>
    %23 = arith.mulf %21, %1 : vector<32x128xf32>
    %cst_13 = arith.constant dense<0.000000e+00> : vector<32x256xf32>
    %24 = tpu.matmul %23, %3, %cst_13 {dimension_numbers = #tpu.dot_dimension_numbers<[1], [0], [0], [1], [0, 0, 1, 1], [], []>} : vector<32x128xf32>, vector<128x256xf32>, vector<32x256xf32> -> vector<32x256xf32>
    %25 = vector.extract_strided_slice %24 {offsets = [0, 0], sizes = [32, 128], strides = [1, 1]} : vector<32x256xf32> to vector<32x128xf32>
    %26 = vector.extract_strided_slice %24 {offsets = [0, 128], sizes = [32, 128], strides = [1, 1]} : vector<32x256xf32> to vector<32x128xf32>
    %27 = tpu.concatenate %0, %23, %5, %25, %6, %26 in 0 : vector<32x128xf32>, vector<32x128xf32>, vector<32x128xf32>, vector<32x128xf32>, vector<32x128xf32>, vector<32x128xf32> -> vector<192x128xf32>
    %c0_14 = arith.constant 0 : index
    %c0_15 = arith.constant 0 : index
    %28 = vector.load %arg6[%c0_14, %c0_15] : memref<32x192xf32, #tpu.memory_space<vmem>>, vector<32x192xf32>
    %cst_16 = arith.constant dense<0.000000e+00> : vector<32x128xf32>
    %29 = tpu.matmul %28, %27, %cst_16 {dimension_numbers = #tpu.dot_dimension_numbers<[1], [0], [0], [1], [0, 0, 1, 1], [], []>} : vector<32x192xf32>, vector<192x128xf32>, vector<32x128xf32> -> vector<32x128xf32>
    %c0_17 = arith.constant 0 : index
    %c0_18 = arith.constant 0 : index
    %30 = vector.load %arg7[%c0_17, %c0_18] : memref<32x1xf32, #tpu.memory_space<vmem>>, vector<32x1xf32>
    %31 = vector.broadcast %30 : vector<32x1xf32> to vector<32x128xf32>
    %32 = arith.addf %29, %31 : vector<32x128xf32>
    %33 = math.tanh %32 : vector<32x128xf32>
    %34 = arith.mulf %22, %1 : vector<32x128xf32>
    %cst_19 = arith.constant 1.000000e+00 : f32
    %35 = vector.broadcast %cst_19 : f32 to vector<32x128xf32>
    %36 = arith.subf %35, %22 : vector<32x128xf32>
    %37 = arith.mulf %36, %33 : vector<32x128xf32>
    %38 = arith.addf %34, %37 : vector<32x128xf32>
    %c0_20 = arith.constant 0 : index
    %c0_21 = arith.constant 0 : index
    %39 = vector.load %arg8[%c0_20, %c0_21] : memref<32x128xf32, #tpu.memory_space<vmem>>, vector<32x128xf32>
    tpu.vector_store %arg8[%c0_20, %c0_21], %38 {strides = array<i32>} : memref<32x128xf32, #tpu.memory_space<vmem>>, vector<32x128xf32>,
    return
  }
  func.func @transform_0(%arg0: i32) -> (i32, i32) {
    %c0_i32 = arith.constant 0 : i32
    %c0_i32_0 = arith.constant 0 : i32
    return %c0_i32, %arg0 : i32, i32
  }
  func.func @transform_1(%arg0: i32) -> (i32, i32) {
    %c0_i32 = arith.constant 0 : i32
    %c0_i32_0 = arith.constant 0 : i32
    return %c0_i32, %arg0 : i32, i32
  }
  func.func @transform_2(%arg0: i32) -> (i32, i32, i32) {
    %c0_i32 = arith.constant 0 : i32
    %c0_i32_0 = arith.constant 0 : i32
    %c0_i32_1 = arith.constant 0 : i32
    return %arg0, %c0_i32, %c0_i32_0 : i32, i32, i32
  }
  func.func @transform_3(%arg0: i32) -> (i32, i32) {
    %c0_i32 = arith.constant 0 : i32
    %c0_i32_0 = arith.constant 0 : i32
    %c0_i32_1 = arith.constant 0 : i32
    return %c0_i32, %c0_i32_0 : i32, i32
  }
  func.func @transform_4(%arg0: i32) -> (i32, i32) {
    %c0_i32 = arith.constant 0 : i32
    %c0_i32_0 = arith.constant 0 : i32
    %c0_i32_1 = arith.constant 0 : i32
    return %c0_i32, %c0_i32_0 : i32, i32
  }
  func.func @transform_5(%arg0: i32) -> (i32, i32) {
    %c0_i32 = arith.constant 0 : i32
    %c0_i32_0 = arith.constant 0 : i32
    %c0_i32_1 = arith.constant 0 : i32
    return %c0_i32, %c0_i32_0 : i32, i32
  }
  func.func @transform_6(%arg0: i32) -> (i32, i32) {
    %c0_i32 = arith.constant 0 : i32
    %c0_i32_0 = arith.constant 0 : i32
    %c0_i32_1 = arith.constant 0 : i32
    return %c0_i32, %c0_i32_0 : i32, i32
  }
  func.func @transform_7(%arg0: i32) -> (i32, i32) {
    %c0_i32 = arith.constant 0 : i32
    %c0_i32_0 = arith.constant 0 : i32
    return %c0_i32, %arg0 : i32, i32
  }
}

</mosaic_0001>

<llo_original>
// kernel: tpu_custom_call.1
$region0: #{tpu_custom_call.1}
  #allocation0 [shape = 'u32[]', space=smem, size = 0x4, offset = 0x4, fixed_abs, tag = 'smem constant byte address 0x4 - core index']
  #allocation1 [shape = 'u32[144,128]{1,0:T(1,128)}', space=vmem, size = 0x12000, scoped, tag = 'internal scratch']
  %s0 = inlined_call_operand.hbm [shape: f32[32,512], index: 0, kind: input, shape index: {}]
  %s1 = inlined_call_operand.hbm [shape: f32[32,512], index: 1, kind: input, shape index: {}]
  %s2 = inlined_call_operand.hbm [shape: f32[4,128,256], index: 2, kind: input, shape index: {}]
  %s3 = inlined_call_operand.hbm [shape: f32[64,192], index: 3, kind: input, shape index: {}]
  %s4 = inlined_call_operand.vmem [shape: f32[64,1], index: 4, kind: input, shape index: {}]
  %s5 = inlined_call_operand.vmem [shape: f32[32,192], index: 5, kind: input, shape index: {}]
  %s6 = inlined_call_operand.vmem [shape: f32[32,1], index: 6, kind: input, shape index: {}]
  %s7 = inlined_call_operand.hbm [shape: f32[32,512], index: 7, kind: output, shape index: {}]
  %s8 = sld [smem:[#allocation0]]
  $region77: #{tpu_custom_call.1} parent=0
    _
  %s10 = ssub.s32 1, %s8
  %s11 = scalar_select 0, %s10, %s8
  $region1: #{tpu_custom_call.1} parent=0
    #allocation2 [shape = 'u8[32768]{0}', space=vmem, size = 0x8000, scoped, tag = 'input window, operand 0']
    #allocation3 [shape = 's32[2]{0}', space=sflag, size = 0x8, scoped, tag = 'scoped memory for tpu_custom_call.1']
    #allocation4 [shape = 's32[2]{0}', space=sflag, size = 0x8, scoped, tag = 'scoped memory for tpu_custom_call.1']
    #allocation5 [shape = 'u8[32768]{0}', space=vmem, size = 0x8000, scoped, tag = 'input window, operand 1']
    #allocation6 [shape = 's32[2]{0}', space=sflag, size = 0x8, scoped, tag = 'scoped memory for tpu_custom_call.1']
    #allocation7 [shape = 'u8[262144]{0}', space=vmem, size = 0x40000, scoped, tag = 'input window, operand 2']
    #allocation8 [shape = 'u8[65536]{0}', space=vmem, size = 0x10000, scoped, tag = 'input window, operand 3, single buffered']
    #allocation9 [shape = 's32[1]{0}', space=sflag, size = 0x4, scoped, tag = 'scoped memory for tpu_custom_call.1']
    #allocation10 [shape = 'u8[32768]{0}', space=vmem, size = 0x8000, scoped, tag = 'output window, operand 0']
    %12 = vsyncpa [#allocation3], 0
    %s13 = scalar_lea.sflag [#allocation3], 1
    %14 = vsyncpa %s13, 0
    %15 = vsyncpa [#allocation6], 0
    %s16 = scalar_lea.sflag [#allocation6], 1
    %17 = vsyncpa %s16, 0
    %18 = vsyncpa [#allocation9], 0
    %19 = vsyncpa [#allocation4], 0
    %s20 = scalar_lea.sflag [#allocation4], 1
    %21 = vsyncpa %s20, 0
    loop: start=0, step=1, limit=6
    $region2: #{tpu_custom_call.1} parent=1 // loop_pre_header
      _
    $region3: #{tpu_custom_call.1} parent=1 // loop_header
      %s23 = sphi 0, %s27
      %p24 = scmp.ge.s32.totalorder %s23, 6
      %s33 = sphi 0, %s35
      %s36 = sphi 0, %s33
      %s37 = sphi 0, %s36
      %s53 = sphi 0, %s37
      %s59 = sphi 0, %s61
      %s62 = sphi 0, %s59
      %s63 = sphi 0, %s62
      %s79 = sphi 0, %s63
      %s85 = sphi 0, %s87
      %s88 = sphi 0, %s85
      %s89 = sphi 0, %s88
      %s105 = sphi 0, %s89
      %s109 = sphi 0, %s109
      %s111 = sphi 0, %s109
      %s112 = sphi 0, %s111
      %s126 = sphi 0, %s112
      %s130 = sphi 0, %s130
      %s132 = sphi 0, %s130
      %s133 = sphi 0, %s132
      %s147 = sphi 0, %s133
      %s151 = sphi 0, %s151
      %s153 = sphi 0, %s151
      %s154 = sphi 0, %s153
      %s168 = sphi 0, %s154
      %s172 = sphi 0, %s172
      %s174 = sphi 0, %s172
      %s175 = sphi 0, %s174
      %s189 = sphi 0, %s175
      %s195 = sphi 0, %s197
      %s198 = sphi 0, %s195
      %s199 = sphi 0, %s198
      %s215 = sphi 0, %s199
    $region4: #{tpu_custom_call.1} parent=1 // loop_header_branch
      %26 = sbr.rel (%p24) target = $region8
    $region5: #{tpu_custom_call.1} parent=1 // loop_body
      %s28 = ssub.s32 %s23, 1
      %s29 = ssub.s32 %s23, 2
      %s30 = sadd.s32 %s23, 1
      %s31 = ssub.s32 %s23, %s30
      %p32 = scmp.eq.s32.totalorder %s31, 0
      %s34 = sadd.s32 %s33, 1
      %s35 = scalar_select %p32, %s33, %s34
      %p38 = pneg %p32
      %p39 = scmp.eq.s32.totalorder %s23, 3
      %p40 = por %p38, %p39
      %p41 = scmp.ne.s32.totalorder %s33, %s36
      %p42 = scmp.eq.s32.totalorder %s23, 0
      %p43 = por %p41, %p42
      %p44 = scmp.ne.s32.totalorder %s33, %s36
      %p45 = scmp.eq.s32.totalorder %s28, 3
      %p46 = por %p44, %p45
      %p47 = scmp.ne.s32.totalorder %s36, %s37
      %p48 = scmp.eq.s32.totalorder %s28, 0
      %p49 = por %p47, %p48
      %p50 = scmp.ne.s32.totalorder %s36, %s37
      %p51 = scmp.eq.s32.totalorder %s29, 3
      %p52 = por %p50, %p51
      %p54 = scmp.ne.s32.totalorder %s37, %s53
      %p55 = scmp.eq.s32.totalorder %s29, 0
      %p56 = por %p54, %p55
      %s57 = ssub.s32 %s23, %s30
      %p58 = scmp.eq.s32.totalorder %s57, 0
      %s60 = sadd.s32 %s59, 1
      %s61 = scalar_select %p58, %s59, %s60
      %p64 = pneg %p58
      %p65 = scmp.eq.s32.totalorder %s23, 3
      %p66 = por %p64, %p65
      %p67 = scmp.ne.s32.totalorder %s59, %s62
      %p68 = scmp.eq.s32.totalorder %s23, 0
      %p69 = por %p67, %p68
      %p70 = scmp.ne.s32.totalorder %s59, %s62
      %p71 = scmp.eq.s32.totalorder %s28, 3
      %p72 = por %p70, %p71
      %p73 = scmp.ne.s32.totalorder %s62, %s63
      %p74 = scmp.eq.s32.totalorder %s28, 0
      %p75 = por %p73, %p74
      %p76 = scmp.ne.s32.totalorder %s62, %s63
      %p77 = scmp.eq.s32.totalorder %s29, 3
      %p78 = por %p76, %p77
      %p80 = scmp.ne.s32.totalorder %s63, %s79
      %p81 = scmp.eq.s32.totalorder %s29, 0
      %p82 = por %p80, %p81
      %s83 = ssub.s32 %s23, %s30
      %p84 = scmp.eq.s32.totalorder %s83, 0
      %s86 = sadd.s32 %s85, 1
      %s87 = scalar_select %p84, %s85, %s86
      %p90 = pneg %p84
      %p91 = scmp.eq.s32.totalorder %s23, 3
      %p92 = por %p90, %p91
      %p93 = scmp.ne.s32.totalorder %s85, %s88
      %p94 = scmp.eq.s32.totalorder %s23, 0
      %p95 = por %p93, %p94
      %p96 = scmp.ne.s32.totalorder %s85, %s88
      %p97 = scmp.eq.s32.totalorder %s28, 3
      %p98 = por %p96, %p97
      %p99 = scmp.ne.s32.totalorder %s88, %s89
      %p100 = scmp.eq.s32.totalorder %s28, 0
      %p101 = por %p99, %p100
      %p102 = scmp.ne.s32.totalorder %s88, %s89
      %p103 = scmp.eq.s32.totalorder %s29, 3
      %p104 = por %p102, %p103
      %p106 = scmp.ne.s32.totalorder %s89, %s105
      %p107 = scmp.eq.s32.totalorder %s29, 0
      %p108 = por %p106, %p107
      %s110 = sadd.s32 %s109, 1
      %p113 = scmp.eq.s32.totalorder %s23, 3
      %p114 = scmp.ne.s32.totalorder %s109, %s111
      %p115 = scmp.eq.s32.totalorder %s23, 0
      %p116 = por %p114, %p115
      %p117 = scmp.ne.s32.totalorder %s109, %s111
      %p118 = scmp.eq.s32.totalorder %s28, 3
      %p119 = por %p117, %p118
      %p120 = scmp.ne.s32.totalorder %s111, %s112
      %p121 = scmp.eq.s32.totalorder %s28, 0
      %p122 = por %p120, %p121
      %p123 = scmp.ne.s32.totalorder %s111, %s112
      %p124 = scmp.eq.s32.totalorder %s29, 3
      %p125 = por %p123, %p124
      %p127 = scmp.ne.s32.totalorder %s112, %s126
      %p128 = scmp.eq.s32.totalorder %s29, 0
      %p129 = por %p127, %p128
      %s131 = sadd.s32 %s130, 1
      %p134 = scmp.eq.s32.totalorder %s23, 3
      %p135 = scmp.ne.s32.totalorder %s130, %s132
      %p136 = scmp.eq.s32.totalorder %s23, 0
      %p137 = por %p135, %p136
      %p138 = scmp.ne.s32.totalorder %s130, %s132
      %p139 = scmp.eq.s32.totalorder %s28, 3
      %p140 = por %p138, %p139
      %p141 = scmp.ne.s32.totalorder %s132, %s133
      %p142 = scmp.eq.s32.totalorder %s28, 0
      %p143 = por %p141, %p142
      %p144 = scmp.ne.s32.totalorder %s132, %s133
      %p145 = scmp.eq.s32.totalorder %s29, 3
      %p146 = por %p144, %p145
      %p148 = scmp.ne.s32.totalorder %s133, %s147
      %p149 = scmp.eq.s32.totalorder %s29, 0
      %p150 = por %p148, %p149
      %s152 = sadd.s32 %s151, 1
      %p155 = scmp.eq.s32.totalorder %s23, 3
      %p156 = scmp.ne.s32.totalorder %s151, %s153
      %p157 = scmp.eq.s32.totalorder %s23, 0
      %p158 = por %p156, %p157
      %p159 = scmp.ne.s32.totalorder %s151, %s153
      %p160 = scmp.eq.s32.totalorder %s28, 3
      %p161 = por %p159, %p160
      %p162 = scmp.ne.s32.totalorder %s153, %s154
      %p163 = scmp.eq.s32.totalorder %s28, 0
      %p164 = por %p162, %p163
      %p165 = scmp.ne.s32.totalorder %s153, %s154
      %p166 = scmp.eq.s32.totalorder %s29, 3
      %p167 = por %p165, %p166
      %p169 = scmp.ne.s32.totalorder %s154, %s168
      %p170 = scmp.eq.s32.totalorder %s29, 0
      %p171 = por %p169, %p170
      %s173 = sadd.s32 %s172, 1
      %p176 = scmp.eq.s32.totalorder %s23, 3
      %p177 = scmp.ne.s32.totalorder %s172, %s174
      %p178 = scmp.eq.s32.totalorder %s23, 0
      %p179 = por %p177, %p178
      %p180 = scmp.ne.s32.totalorder %s172, %s174
      %p181 = scmp.eq.s32.totalorder %s28, 3
      %p182 = por %p180, %p181
      %p183 = scmp.ne.s32.totalorder %s174, %s175
      %p184 = scmp.eq.s32.totalorder %s28, 0
      %p185 = por %p183, %p184
      %p186 = scmp.ne.s32.totalorder %s174, %s175
      %p187 = scmp.eq.s32.totalorder %s29, 3
      %p188 = por %p186, %p187
      %p190 = scmp.ne.s32.totalorder %s175, %s189
      %p191 = scmp.eq.s32.totalorder %s29, 0
      %p192 = por %p190, %p191
      %s193 = ssub.s32 %s23, %s30
      %p194 = scmp.eq.s32.totalorder %s193, 0
      %s196 = sadd.s32 %s195, 1
      %s197 = scalar_select %p194, %s195, %s196
      %p200 = pneg %p194
      %p201 = scmp.eq.s32.totalorder %s23, 3
      %p202 = por %p200, %p201
      %p203 = scmp.ne.s32.totalorder %s195, %s198
      %p204 = scmp.eq.s32.totalorder %s23, 0
      %p205 = por %p203, %p204
      %p206 = scmp.ne.s32.totalorder %s195, %s198
      %p207 = scmp.eq.s32.totalorder %s28, 3
      %p208 = por %p206, %p207
      %p209 = scmp.ne.s32.totalorder %s198, %s199
      %p210 = scmp.eq.s32.totalorder %s28, 0
      %p211 = por %p209, %p210
      %p212 = scmp.ne.s32.totalorder %s198, %s199
      %p213 = scmp.eq.s32.totalorder %s29, 3
      %p214 = por %p212, %p213
      %p216 = scmp.ne.s32.totalorder %s199, %s215
      %p217 = scmp.eq.s32.totalorder %s29, 0
      %p218 = por %p216, %p217
      %p219 = scmp.le.s32.totalorder 1, %s23
      %p220 = scmp.lt.s32.totalorder %s23, 5
      %p221 = pnand %p219, %p220
      %p222 = pneg %p221
      // Predicated region
      $region9: #{tpu_custom_call.1} parent=5 // pred_check
        _
      $region10: #{tpu_custom_call.1} parent=5 // pred_check_branch
        %224 = sbr.rel (%p221) target = $region12
      $region11: #{tpu_custom_call.1} parent=5 // pred_region
        %s225 = ssub.s32 %s23, 1
        // Predicated region
        $region13: #{tpu_custom_call.1} parent=11 // pred_check
          %p226 = pneg %p122
        $region14: #{tpu_custom_call.1} parent=11 // pred_check_branch
          %228 = sbr.rel (%p226) target = $region16
        $region15: #{tpu_custom_call.1} parent=11 // pred_region
          %s230 = ssub.s32 2048, 2048
          %231 = vsyncadd [#allocation9], %s230
          %s232 = sshll.u32 [#allocation8], 4
          %s233 = int_to_ptr.vmem [resolvable:$true] %s232
          %238 = dma.hbm_to_vmem [thread:$0]  %s3, 2048, %s233, [#allocation9], 256, 256, 16
        $region16: #{tpu_custom_call.1} parent=11 // pred_fallthru
          _
        // Predicated region
        $region17: #{tpu_custom_call.1} parent=11 // pred_check
          %p239 = pneg %p143
        $region18: #{tpu_custom_call.1} parent=11 // pred_check_branch
          %241 = sbr.rel (%p239) target = $region20
        $region19: #{tpu_custom_call.1} parent=11 // pred_region
          _
        $region20: #{tpu_custom_call.1} parent=11 // pred_fallthru
          _
        // Predicated region
        $region21: #{tpu_custom_call.1} parent=11 // pred_check
          %p242 = pneg %p164
        $region22: #{tpu_custom_call.1} parent=11 // pred_check_branch
          %244 = sbr.rel (%p242) target = $region24
        $region23: #{tpu_custom_call.1} parent=11 // pred_region
          _
        $region24: #{tpu_custom_call.1} parent=11 // pred_fallthru
          _
        // Predicated region
        $region25: #{tpu_custom_call.1} parent=11 // pred_check
          %p245 = pneg %p185
        $region26: #{tpu_custom_call.1} parent=11 // pred_check_branch
          %247 = sbr.rel (%p245) target = $region28
        $region27: #{tpu_custom_call.1} parent=11 // pred_region
          _
        $region28: #{tpu_custom_call.1} parent=11 // pred_fallthru
          _
      $region12: #{tpu_custom_call.1} parent=5 // pred_fallthru
        _
      %p248 = scmp.lt.s32.totalorder %s23, 4
      // Predicated region
      $region29: #{tpu_custom_call.1} parent=5 // pred_check
        %p249 = pneg %p248
      $region30: #{tpu_custom_call.1} parent=5 // pred_check_branch
        %251 = sbr.rel (%p249) target = $region32
      $region31: #{tpu_custom_call.1} parent=5 // pred_region
        // Predicated region
        $region33: #{tpu_custom_call.1} parent=31 // pred_check
          %p252 = pneg %p43
        $region34: #{tpu_custom_call.1} parent=31 // pred_check_branch
          %254 = sbr.rel (%p252) target = $region36
        $region35: #{tpu_custom_call.1} parent=31 // pred_region
          %s255 = sand.u32 %s33, 1
          %s256 = scalar_lea.sflag [#allocation3], %s255
          %s257 = sand.u32 %s33, 1
          %s258 = smul.addr %s257, 32
          %s259 = scalar_lea.vmem [#allocation2], %s258
          %s261 = ssub.s32 512, 512
          %262 = vsyncadd %s256, %s261
          %s263 = smul.addr %s23, 128
          %s264 = scalar_lea.hbm %s0, %s263
          %s265 = sshll.u32 %s259, 4
          %s266 = int_to_ptr.vmem [resolvable:$true] %s265
          %271 = dma.hbm_to_vmem [thread:$0]  %s264, 512, %s266, %s256, 512, 128, 8
        $region36: #{tpu_custom_call.1} parent=31 // pred_fallthru
          _
        // Predicated region
        $region37: #{tpu_custom_call.1} parent=31 // pred_check
          %p272 = pneg %p69
        $region38: #{tpu_custom_call.1} parent=31 // pred_check_branch
          %274 = sbr.rel (%p272) target = $region40
        $region39: #{tpu_custom_call.1} parent=31 // pred_region
          %s275 = sand.u32 %s23, 1
          %s276 = scalar_lea.sflag [#allocation6], %s275
          %s277 = sand.u32 %s59, 1
          %s278 = smul.addr %s277, 32
          %s279 = scalar_lea.vmem [#allocation5], %s278
          %s281 = ssub.s32 512, 512
          %282 = vsyncadd %s276, %s281
          %s283 = smul.addr %s23, 128
          %s284 = scalar_lea.hbm %s1, %s283
          %s285 = sshll.u32 %s279, 4
          %s286 = int_to_ptr.vmem [resolvable:$true] %s285
          %291 = dma.hbm_to_vmem [thread:$0]  %s284, 512, %s286, %s276, 512, 128, 8
        $region40: #{tpu_custom_call.1} parent=31 // pred_fallthru
          _
        // Predicated region
        $region41: #{tpu_custom_call.1} parent=31 // pred_check
          %p292 = pneg %p95
        $region42: #{tpu_custom_call.1} parent=31 // pred_check_branch
          %294 = sbr.rel (%p292) target = $region44
        $region43: #{tpu_custom_call.1} parent=31 // pred_region
          %s295 = sand.u32 %s23, 1
          %s296 = scalar_lea.sflag [#allocation6], %s295
          %s297 = sand.u32 %s85, 1
          %s298 = smul.addr %s297, 256
          %s299 = scalar_lea.vmem [#allocation7], %s298
          %s301 = ssub.s32 4096, 4096
          %302 = vsyncadd %s296, %s301
          %s303 = smul.addr %s23, 32
          %s304 = smul.addr %s303, 128
          %s305 = scalar_lea.hbm %s2, %s304
          %s306 = sshll.u32 %s299, 4
          %s307 = int_to_ptr.vmem [resolvable:$true] %s306
          %312 = dma.hbm_to_vmem [thread:$0]  %s305, 4096, %s307, %s296, 256, 256, 16
        $region44: #{tpu_custom_call.1} parent=31 // pred_fallthru
          _
      $region32: #{tpu_custom_call.1} parent=5 // pred_fallthru
        _
      %p313 = scmp.le.s32.totalorder 1, %s23
      %p314 = scmp.lt.s32.totalorder %s23, 5
      %p315 = pnand %p313, %p314
      %p316 = pneg %p315
      // Predicated region
      $region45: #{tpu_custom_call.1} parent=5 // pred_check
        _
      $region46: #{tpu_custom_call.1} parent=5 // pred_check_branch
        %318 = sbr.rel (%p315) target = $region48
      $region47: #{tpu_custom_call.1} parent=5 // pred_region
        %s319 = ssub.s32 %s23, 1
        %s320 = sand.u32 %s36, 1
        %s321 = scalar_lea.sflag [#allocation3], %s320
        %s322 = sand.u32 %s36, 1
        %s323 = smul.addr %s322, 32
        %s324 = scalar_lea.vmem [#allocation2], %s323
        // Predicated region
        $region49: #{tpu_custom_call.1} parent=47 // pred_check
          %p325 = pneg %p49
        $region50: #{tpu_custom_call.1} parent=47 // pred_check_branch
          %327 = sbr.rel (%p325) target = $region52
        $region51: #{tpu_custom_call.1} parent=47 // pred_region
          %328 = dma.done %s321, 512
        $region52: #{tpu_custom_call.1} parent=47 // pred_fallthru
          _
        %s329 = sand.u32 %s28, 1
        %s330 = scalar_lea.sflag [#allocation6], %s329
        %s331 = sand.u32 %s62, 1
        %s332 = smul.addr %s331, 32
        %s333 = scalar_lea.vmem [#allocation5], %s332
        // Predicated region
        $region53: #{tpu_custom_call.1} parent=47 // pred_check
          %p334 = pneg %p75
        $region54: #{tpu_custom_call.1} parent=47 // pred_check_branch
          %336 = sbr.rel (%p334) target = $region56
        $region55: #{tpu_custom_call.1} parent=47 // pred_region
          %337 = dma.done %s330, 512
        $region56: #{tpu_custom_call.1} parent=47 // pred_fallthru
          _
        %s338 = sand.u32 %s28, 1
        %s339 = scalar_lea.sflag [#allocation6], %s338
        %s340 = sand.u32 %s88, 1
        %s341 = smul.addr %s340, 256
        %s342 = scalar_lea.vmem [#allocation7], %s341
        // Predicated region
        $region57: #{tpu_custom_call.1} parent=47 // pred_check
          %p343 = pneg %p101
        $region58: #{tpu_custom_call.1} parent=47 // pred_check_branch
          %345 = sbr.rel (%p343) target = $region60
        $region59: #{tpu_custom_call.1} parent=47 // pred_region
          %346 = dma.done %s339, 4096
        $region60: #{tpu_custom_call.1} parent=47 // pred_fallthru
          _
        // Predicated region
        $region61: #{tpu_custom_call.1} parent=47 // pred_check
          %p347 = pneg %p122
        $region62: #{tpu_custom_call.1} parent=47 // pred_check_branch
          %349 = sbr.rel (%p347) target = $region64
        $region63: #{tpu_custom_call.1} parent=47 // pred_region
          %350 = dma.done [#allocation9], 2048
        $region64: #{tpu_custom_call.1} parent=47 // pred_fallthru
          _
        %s351 = sand.u32 %s36, 1
        %s352 = scalar_lea.sflag [#allocation3], %s351
        %s353 = sand.u32 %s36, 1
        %s354 = smul.addr %s353, 32
        %s355 = scalar_lea.vmem [#allocation2], %s354
        %p356 = pneg %p49
        %p357 = pneg %p46
        %s358 = sand.u32 %s28, 1
        %s359 = scalar_lea.sflag [#allocation6], %s358
        %s360 = sand.u32 %s62, 1
        %s361 = smul.addr %s360, 32
        %s362 = scalar_lea.vmem [#allocation5], %s361
        %p363 = pneg %p75
        %p364 = pneg %p72
        %s365 = sand.u32 %s28, 1
        %s366 = scalar_lea.sflag [#allocation6], %s365
        %s367 = sand.u32 %s88, 1
        %s368 = smul.addr %s367, 256
        %s369 = scalar_lea.vmem [#allocation7], %s368
        %p370 = pneg %p101
        %p371 = pneg %p98
        %p372 = pneg %p122
        %p373 = pneg %p119
        %p374 = pneg %p143
        %p375 = pneg %p140
        %p376 = pneg %p164
        %p377 = pneg %p161
        %p378 = pneg %p185
        %p379 = pneg %p182
        %p380 = pneg %p211
        %p381 = pneg %p208
        %s382 = sand.u32 %s198, 1
        %s383 = scalar_lea.sflag [#allocation4], %s382
        %s384 = sand.u32 %s198, 1
        %s385 = smul.addr %s384, 32
        %s386 = scalar_lea.vmem [#allocation10], %s385
        %v387 = vld [vmem:[%s324] sm:$0xff]
        %v388 = vld [vmem:[%s324 + $0x8] sm:$0xff]
        %v389 = vld [vmem:[%s324 + $0x10] sm:$0xff]
        %v390 = vld [vmem:[%s324 + $0x18] sm:$0xff]
        %v391 = vld [vmem:[%s333] sm:$0xff]
        %v392 = vld [vmem:[%s333 + $0x8] sm:$0xff]
        %v393 = vld [vmem:[%s333 + $0x10] sm:$0xff]
        %v394 = vld [vmem:[%s333 + $0x18] sm:$0xff]
        %v395 = vld [vmem:[%s342] sm:$0xff]
        %v396 = vld [vmem:[%s342 + $0x8] sm:$0xff]
        %v397 = vld [vmem:[%s342 + $0x10] sm:$0xff]
        %v398 = vld [vmem:[%s342 + $0x18] sm:$0xff]
        %v399 = vld [vmem:[%s342 + $0x20] sm:$0xff]
        %v400 = vld [vmem:[%s342 + $0x28] sm:$0xff]
        %v401 = vld [vmem:[%s342 + $0x30] sm:$0xff]
        %v402 = vld [vmem:[%s342 + $0x38] sm:$0xff]
        %v403 = vld [vmem:[%s342 + $0x40] sm:$0xff]
        %v404 = vld [vmem:[%s342 + $0x48] sm:$0xff]
        %v405 = vld [vmem:[%s342 + $0x50] sm:$0xff]
        %v406 = vld [vmem:[%s342 + $0x58] sm:$0xff]
        %v407 = vld [vmem:[%s342 + $0x60] sm:$0xff]
        %v408 = vld [vmem:[%s342 + $0x68] sm:$0xff]
        %v409 = vld [vmem:[%s342 + $0x70] sm:$0xff]
        %v410 = vld [vmem:[%s342 + $0x78] sm:$0xff]
        %v411 = vld [vmem:[%s342 + $0x80] sm:$0xff]
        %v412 = vld [vmem:[%s342 + $0x88] sm:$0xff]
        %v413 = vld [vmem:[%s342 + $0x90] sm:$0xff]
        %v414 = vld [vmem:[%s342 + $0x98] sm:$0xff]
        %v415 = vld [vmem:[%s342 + $0xa0] sm:$0xff]
        %v416 = vld [vmem:[%s342 + $0xa8] sm:$0xff]
        %v417 = vld [vmem:[%s342 + $0xb0] sm:$0xff]
        %v418 = vld [vmem:[%s342 + $0xb8] sm:$0xff]
        %v419 = vld [vmem:[%s342 + $0xc0] sm:$0xff]
        %v420 = vld [vmem:[%s342 + $0xc8] sm:$0xff]
        %v421 = vld [vmem:[%s342 + $0xd0] sm:$0xff]
        %v422 = vld [vmem:[%s342 + $0xd8] sm:$0xff]
        %v423 = vld [vmem:[%s342 + $0xe0] sm:$0xff]
        %v424 = vld [vmem:[%s342 + $0xe8] sm:$0xff]
        %v425 = vld [vmem:[%s342 + $0xf0] sm:$0xff]
        %v426 = vld [vmem:[%s342 + $0xf8] sm:$0xff]
        %427 = vmatprep.subr.mxu0 %v396
        %428 = vmatpush1.msra.mxu0 %v395
        %429 = vmatprep.subr.mxu0 %v398
        %430 = vmatpush1.msra.mxu0 %v397
        %431 = vmatprep.subr.mxu0 %v400
        %432 = vmatpush1.msra.mxu0 %v399
        %433 = vmatprep.subr.mxu0 %v402
        %434 = vmatpush1.msra.mxu0 %v401
        %435 = vmatprep.subr.mxu0 %v404
        %436 = vmatpush1.msra.mxu0 %v403
        %437 = vmatprep.subr.mxu0 %v406
        %438 = vmatpush1.msra.mxu0 %v405
        %439 = vmatprep.subr.mxu0 %v408
        %440 = vmatpush1.msra.mxu0 %v407
        %441 = vmatprep.subr.mxu0 %v410
        %442 = vmatpush1.msra.mxu0 %v409
        %443 = vmatprep.subr.mxu0 %v412
        %444 = vmatpush1.msra.mxu0 %v411
        %445 = vmatprep.subr.mxu0 %v414
        %446 = vmatpush1.msra.mxu0 %v413
        %447 = vmatprep.subr.mxu0 %v416
        %448 = vmatpush1.msra.mxu0 %v415
        %449 = vmatprep.subr.mxu0 %v418
        %450 = vmatpush1.msra.mxu0 %v417
        %451 = vmatprep.subr.mxu0 %v420
        %452 = vmatpush1.msra.mxu0 %v419
        %453 = vmatprep.subr.mxu0 %v422
        %454 = vmatpush1.msra.mxu0 %v421
        %455 = vmatprep.subr.mxu0 %v424
        %456 = vmatpush1.msra.mxu0 %v423
        %457 = vmatprep.subr.mxu0 %v426
        %458 = vmatpush1.msra.mxu0 %v425
        %459 = vmatprep.subr.mxu0 0.0
        %460 = vmatpush1.msra.mxu0 0.0
        %461 = vmatprep.subr.mxu0 0.0
        %462 = vmatpush1.msra.mxu0 0.0
        %463 = vmatprep.subr.mxu0 0.0
        %464 = vmatpush1.msra.mxu0 0.0
        %465 = vmatprep.subr.mxu0 0.0
        %466 = vmatpush1.msra.mxu0 0.0
        %467 = vmatprep.subr.mxu0 0.0
        %468 = vmatpush1.msra.mxu0 0.0
        %469 = vmatprep.subr.mxu0 0.0
        %470 = vmatpush1.msra.mxu0 0.0
        %471 = vmatprep.subr.mxu0 0.0
        %472 = vmatpush1.msra.mxu0 0.0
        %473 = vmatprep.subr.mxu0 0.0
        %474 = vmatpush1.msra.mxu0 0.0
        %475 = vmatprep.subr.mxu0 0.0
        %476 = vmatpush1.msra.mxu0 0.0
        %477 = vmatprep.subr.mxu0 0.0
        %478 = vmatpush1.msra.mxu0 0.0
        %479 = vmatprep.subr.mxu0 0.0
        %480 = vmatpush1.msra.mxu0 0.0
        %481 = vmatprep.subr.mxu0 0.0
        %482 = vmatpush1.msra.mxu0 0.0
        %483 = vmatprep.subr.mxu0 0.0
        %484 = vmatpush1.msra.mxu0 0.0
        %485 = vmatprep.subr.mxu0 0.0
        %486 = vmatpush1.msra.mxu0 0.0
        %487 = vmatprep.subr.mxu0 0.0
        %488 = vmatpush1.msra.mxu0 0.0
        %489 = vmatprep.subr.mxu0 0.0
        %490 = vmatpush1.msra.mxu0 0.0
        %491 = vmatprep.mubr.f32.mxu0 0.0
        %492 = vmatmul.mubr.f32.gmra.mrb[0].mxu0 %v387
        %v493 = vpop.f32.mrb[0].mxu0
        %v494 = vadd.f32 0.0, %v493
        %v495 = vpop.f32.mrb[0].mxu0
        %v496 = vadd.f32 0.0, %v495
        %497 = vmatprep.mubr.f32.mxu0 0.0
        %498 = vmatmul.mubr.f32.gmra.mrb[0].mxu0 %v388
        %v499 = vpop.f32.mrb[0].mxu0
        %v500 = vadd.f32 0.0, %v499
        %v501 = vpop.f32.mrb[0].mxu0
        %v502 = vadd.f32 0.0, %v501
        %503 = vmatprep.mubr.f32.mxu0 0.0
        %504 = vmatmul.mubr.f32.gmra.mrb[0].mxu0 %v389
        %v505 = vpop.f32.mrb[0].mxu0
        %v506 = vadd.f32 0.0, %v505
        %v507 = vpop.f32.mrb[0].mxu0
        %v508 = vadd.f32 0.0, %v507
        %509 = vmatprep.mubr.f32.mxu0 0.0
        %510 = vmatmul.mubr.f32.gmra.mrb[0].mxu0 %v390
        %v511 = vpop.f32.mrb[0].mxu0
        %v512 = vadd.f32 0.0, %v511
        %v513 = vpop.f32.mrb[0].mxu0
        %v514 = vadd.f32 0.0, %v513
        %515 = vdwg.mxu0
        %516 = vmatprep.subr.mxu0 %v396
        %517 = vmatpush1.msra.mxu0 %v395
        %518 = vmatprep.subr.mxu0 %v398
        %519 = vmatpush1.msra.mxu0 %v397
        %520 = vmatprep.subr.mxu0 %v400
        %521 = vmatpush1.msra.mxu0 %v399
        %522 = vmatprep.subr.mxu0 %v402
        %523 = vmatpush1.msra.mxu0 %v401
        %524 = vmatprep.subr.mxu0 %v404
        %525 = vmatpush1.msra.mxu0 %v403
        %526 = vmatprep.subr.mxu0 %v406
        %527 = vmatpush1.msra.mxu0 %v405
        %528 = vmatprep.subr.mxu0 %v408
        %529 = vmatpush1.msra.mxu0 %v407
        %530 = vmatprep.subr.mxu0 %v410
        %531 = vmatpush1.msra.mxu0 %v409
        %532 = vmatprep.subr.mxu0 %v412
        %533 = vmatpush1.msra.mxu0 %v411
        %534 = vmatprep.subr.mxu0 %v414
        %535 = vmatpush1.msra.mxu0 %v413
        %536 = vmatprep.subr.mxu0 %v416
        %537 = vmatpush1.msra.mxu0 %v415
        %538 = vmatprep.subr.mxu0 %v418
        %539 = vmatpush1.msra.mxu0 %v417
        %540 = vmatprep.subr.mxu0 %v420
        %541 = vmatpush1.msra.mxu0 %v419
        %542 = vmatprep.subr.mxu0 %v422
        %543 = vmatpush1.msra.mxu0 %v421
        %544 = vmatprep.subr.mxu0 %v424
        %545 = vmatpush1.msra.mxu0 %v423
        %546 = vmatprep.subr.mxu0 %v426
        %547 = vmatpush1.msra.mxu0 %v425
        %548 = vmatprep.subr.mxu0 0.0
        %549 = vmatpush1.msra.mxu0 0.0
        %550 = vmatprep.subr.mxu0 0.0
        %551 = vmatpush1.msra.mxu0 0.0
        %552 = vmatprep.subr.mxu0 0.0
        %553 = vmatpush1.msra.mxu0 0.0
        %554 = vmatprep.subr.mxu0 0.0
        %555 = vmatpush1.msra.mxu0 0.0
        %556 = vmatprep.subr.mxu0 0.0
        %557 = vmatpush1.msra.mxu0 0.0
        %558 = vmatprep.subr.mxu0 0.0
        %559 = vmatpush1.msra.mxu0 0.0
        %560 = vmatprep.subr.mxu0 0.0
        %561 = vmatpush1.msra.mxu0 0.0
        %562 = vmatprep.subr.mxu0 0.0
        %563 = vmatpush1.msra.mxu0 0.0
        %564 = vmatprep.subr.mxu0 0.0
        %565 = vmatpush1.msra.mxu0 0.0
        %566 = vmatprep.subr.mxu0 0.0
        %567 = vmatpush1.msra.mxu0 0.0
        %568 = vmatprep.subr.mxu0 0.0
        %569 = vmatpush1.msra.mxu0 0.0
        %570 = vmatprep.subr.mxu0 0.0
        %571 = vmatpush1.msra.mxu0 0.0
        %572 = vmatprep.subr.mxu0 0.0
        %573 = vmatpush1.msra.mxu0 0.0
        %574 = vmatprep.subr.mxu0 0.0
        %575 = vmatpush1.msra.mxu0 0.0
        %576 = vmatprep.subr.mxu0 0.0
        %577 = vmatpush1.msra.mxu0 0.0
        %578 = vmatprep.subr.mxu0 0.0
        %579 = vmatpush1.msra.mxu0 0.0
        %580 = vmatprep.mubr.f32.mxu0 0.0
        %581 = vmatmul.mubr.f32.gmra.mrb[0].mxu0 %v391
        %v582 = vpop.f32.mrb[0].mxu0
        %v583 = vadd.f32 0.0, %v582
        %v584 = vpop.f32.mrb[0].mxu0
        %v585 = vadd.f32 0.0, %v584
        %586 = vmatprep.mubr.f32.mxu0 0.0
        %587 = vmatmul.mubr.f32.gmra.mrb[0].mxu0 %v392
        %v588 = vpop.f32.mrb[0].mxu0
        %v589 = vadd.f32 0.0, %v588
        %v590 = vpop.f32.mrb[0].mxu0
        %v591 = vadd.f32 0.0, %v590
        %592 = vmatprep.mubr.f32.mxu0 0.0
        %593 = vmatmul.mubr.f32.gmra.mrb[0].mxu0 %v393
        %v594 = vpop.f32.mrb[0].mxu0
        %v595 = vadd.f32 0.0, %v594
        %v596 = vpop.f32.mrb[0].mxu0
        %v597 = vadd.f32 0.0, %v596
        %598 = vmatprep.mubr.f32.mxu0 0.0
        %599 = vmatmul.mubr.f32.gmra.mrb[0].mxu0 %v394
        %v600 = vpop.f32.mrb[0].mxu0
        %v601 = vadd.f32 0.0, %v600
        %v602 = vpop.f32.mrb[0].mxu0
        %v603 = vadd.f32 0.0, %v602
        %604 = vdwg.mxu0
        %v605 = vld [vmem:[#allocation8] sm:$0xff]
        %v606 = vld [vmem:[#allocation8 + $0x8] sm:$0xff]
        %v607 = vld [vmem:[#allocation8 + $0x10] sm:$0xff]
        %v608 = vld [vmem:[#allocation8 + $0x18] sm:$0xff]
        %v609 = vld [vmem:[#allocation8 + $0x20] sm:$0xff]
        %v610 = vld [vmem:[#allocation8 + $0x28] sm:$0xff]
        %v611 = vld [vmem:[#allocation8 + $0x30] sm:$0xff]
        %v612 = vld [vmem:[#allocation8 + $0x38] sm:$0xff]
        %v613 = vld [vmem:[#allocation8 + $0x40] sm:$0xff]
        %v614 = vld [vmem:[#allocation8 + $0x48] sm:$0xff]
        %v615 = vld [vmem:[#allocation8 + $0x50] sm:$0xff]
        %v616 = vld [vmem:[#allocation8 + $0x58] sm:$0xff]
        %v617 = vld [vmem:[#allocation8 + $0x60] sm:$0xff]
        %v618 = vld [vmem:[#allocation8 + $0x68] sm:$0xff]
        %v619 = vld [vmem:[#allocation8 + $0x70] sm:$0xff]
        %v620 = vld [vmem:[#allocation8 + $0x78] sm:$0xff]
        %v621 = vld [vmem:[%s4] sm:$0xff]
        %v622 = vld [vmem:[%s4 + $0x8] sm:$0xff]
        %v623 = vld [vmem:[%s4 + $0x10] sm:$0xff]
        %v624 = vld [vmem:[%s4 + $0x18] sm:$0xff]
        %v625 = vld [vmem:[%s4 + $0x20] sm:$0xff]
        %v626 = vld [vmem:[%s4 + $0x28] sm:$0xff]
        %v627 = vld [vmem:[%s4 + $0x30] sm:$0xff]
        %v628 = vld [vmem:[%s4 + $0x38] sm:$0xff]
        %630 = vset.pattern.permute.xlu0 0
        %631 = vperm.xlu0 %630, %v621
        %v632 = vpop.permute.xlu0 %631
        %635 = vset.pattern.permute.xlu0 0
        %636 = vperm.xlu0 %635, %v622
        %v637 = vpop.permute.xlu0 %636
        %640 = vset.pattern.permute.xlu0 0
        %641 = vperm.xlu0 %640, %v623
        %v642 = vpop.permute.xlu0 %641
        %645 = vset.pattern.permute.xlu0 0
        %646 = vperm.xlu0 %645, %v624
        %v647 = vpop.permute.xlu0 %646
        %650 = vset.pattern.permute.xlu0 0
        %651 = vperm.xlu0 %650, %v625
        %v652 = vpop.permute.xlu0 %651
        %655 = vset.pattern.permute.xlu0 0
        %656 = vperm.xlu0 %655, %v626
        %v657 = vpop.permute.xlu0 %656
        %660 = vset.pattern.permute.xlu0 0
        %661 = vperm.xlu0 %660, %v627
        %v662 = vpop.permute.xlu0 %661
        %665 = vset.pattern.permute.xlu0 0
        %666 = vperm.xlu0 %665, %v628
        %v667 = vpop.permute.xlu0 %666
        %vm669 = vcmask 523264
        %v671 = vsel %vm669, %v606, 0
        %v674 = vsel %vm669, %v608, 0
        %v677 = vsel %vm669, %v610, 0
        %v680 = vsel %vm669, %v612, 0
        %v683 = vsel %vm669, %v614, 0
        %v686 = vsel %vm669, %v616, 0
        %v689 = vsel %vm669, %v618, 0
        %v692 = vsel %vm669, %v620, 0
        %694 = vmatprep.subr.mxu0 0.0
        %695 = vmatpush1.msra.mxu0 %v387
        %696 = vmatprep.subr.mxu0 0.0
        %697 = vmatpush1.msra.mxu0 %v388
        %698 = vmatprep.subr.mxu0 0.0
        %699 = vmatpush1.msra.mxu0 %v389
        %700 = vmatprep.subr.mxu0 0.0
        %701 = vmatpush1.msra.mxu0 %v390
        %702 = vmatprep.subr.mxu0 0.0
        %703 = vmatpush1.msra.mxu0 %v391
        %704 = vmatprep.subr.mxu0 0.0
        %705 = vmatpush1.msra.mxu0 %v392
        %706 = vmatprep.subr.mxu0 0.0
        %707 = vmatpush1.msra.mxu0 %v393
        %708 = vmatprep.subr.mxu0 0.0
        %709 = vmatpush1.msra.mxu0 %v394
        %710 = vmatprep.subr.mxu0 0.0
        %711 = vmatpush1.msra.mxu0 %v494
        %712 = vmatprep.subr.mxu0 0.0
        %713 = vmatpush1.msra.mxu0 %v500
        %714 = vmatprep.subr.mxu0 0.0
        %715 = vmatpush1.msra.mxu0 %v506
        %716 = vmatprep.subr.mxu0 0.0
        %717 = vmatpush1.msra.mxu0 %v512
        %718 = vmatprep.subr.mxu0 0.0
        %719 = vmatpush1.msra.mxu0 %v583
        %720 = vmatprep.subr.mxu0 0.0
        %721 = vmatpush1.msra.mxu0 %v589
        %722 = vmatprep.subr.mxu0 0.0
        %723 = vmatpush1.msra.mxu0 %v595
        %724 = vmatprep.subr.mxu0 0.0
        %725 = vmatpush1.msra.mxu0 %v601
        %726 = vmatprep.subr.mxu0 0.0
        %727 = vmatpush1.msra.mxu0 %v496
        %728 = vmatprep.subr.mxu0 0.0
        %729 = vmatpush1.msra.mxu0 %v502
        %730 = vmatprep.subr.mxu0 0.0
        %731 = vmatpush1.msra.mxu0 %v508
        %732 = vmatprep.subr.mxu0 0.0
        %733 = vmatpush1.msra.mxu0 %v514
        %734 = vmatprep.subr.mxu0 0.0
        %735 = vmatpush1.msra.mxu0 %v585
        %736 = vmatprep.subr.mxu0 0.0
        %737 = vmatpush1.msra.mxu0 %v591
        %738 = vmatprep.subr.mxu0 0.0
        %739 = vmatpush1.msra.mxu0 %v597
        %740 = vmatprep.subr.mxu0 0.0
        %741 = vmatpush1.msra.mxu0 %v603
        %742 = vmatprep.subr.mxu0 0.0
        %743 = vmatpush1.msra.mxu0 0.0
        %744 = vmatprep.subr.mxu0 0.0
        %745 = vmatpush1.msra.mxu0 0.0
        %746 = vmatprep.subr.mxu0 0.0
        %747 = vmatpush1.msra.mxu0 0.0
        %748 = vmatprep.subr.mxu0 0.0
        %749 = vmatpush1.msra.mxu0 0.0
        %750 = vmatprep.subr.mxu0 0.0
        %751 = vmatpush1.msra.mxu0 0.0
        %752 = vmatprep.subr.mxu0 0.0
        %753 = vmatpush1.msra.mxu0 0.0
        %754 = vmatprep.subr.mxu0 0.0
        %755 = vmatpush1.msra.mxu0 0.0
        %756 = vmatprep.subr.mxu0 0.0
        %757 = vmatpush1.msra.mxu0 0.0
        %758 = vmatprep.mubr.f32.mxu0 %v671
        %759 = vmatmul.mubr.f32.gmra.mrb[0].mxu0 %v605
        %v760 = vpop.f32.mrb[0].mxu0
        %v761 = vadd.f32 %v632, %v760
        %v762 = vpop.f32.mrb[0].mxu0
        %763 = vmatprep.mubr.f32.mxu0 %v674
        %764 = vmatmul.mubr.f32.gmra.mrb[0].mxu0 %v607
        %v765 = vpop.f32.mrb[0].mxu0
        %v766 = vadd.f32 %v637, %v765
        %v767 = vpop.f32.mrb[0].mxu0
        %768 = vmatprep.mubr.f32.mxu0 %v677
        %769 = vmatmul.mubr.f32.gmra.mrb[0].mxu0 %v609
        %v770 = vpop.f32.mrb[0].mxu0
        %v771 = vadd.f32 %v642, %v770
        %v772 = vpop.f32.mrb[0].mxu0
        %773 = vmatprep.mubr.f32.mxu0 %v680
        %774 = vmatmul.mubr.f32.gmra.mrb[0].mxu0 %v611
        %v775 = vpop.f32.mrb[0].mxu0
        %v776 = vadd.f32 %v647, %v775
        %v777 = vpop.f32.mrb[0].mxu0
        %778 = vmatprep.mubr.f32.mxu0 %v683
        %779 = vmatmul.mubr.f32.gmra.mrb[0].mxu0 %v613
        %v780 = vpop.f32.mrb[0].mxu0
        %v781 = vadd.f32 %v652, %v780
        %v782 = vpop.f32.mrb[0].mxu0
        %783 = vmatprep.mubr.f32.mxu0 %v686
        %784 = vmatmul.mubr.f32.gmra.mrb[0].mxu0 %v615
        %v785 = vpop.f32.mrb[0].mxu0
        %v786 = vadd.f32 %v657, %v785
        %v787 = vpop.f32.mrb[0].mxu0
        %788 = vmatprep.mubr.f32.mxu0 %v689
        %789 = vmatmul.mubr.f32.gmra.mrb[0].mxu0 %v617
        %v790 = vpop.f32.mrb[0].mxu0
        %v791 = vadd.f32 %v662, %v790
        %v792 = vpop.f32.mrb[0].mxu0
        %793 = vmatprep.mubr.f32.mxu0 %v692
        %794 = vmatmul.mubr.f32.gmra.mrb[0].mxu0 %v619
        %v795 = vpop.f32.mrb[0].mxu0
        %v796 = vadd.f32 %v667, %v795
        %v797 = vpop.f32.mrb[0].mxu0
        %798 = vdwg.mxu0
        %v799 = vxor.u32 %v761, 2147483648
        %v800 = vxor.u32 %v766, 2147483648
        %v801 = vxor.u32 %v771, 2147483648
        %v802 = vxor.u32 %v776, 2147483648
        %v803 = vxor.u32 %v781, 2147483648
        %v804 = vxor.u32 %v786, 2147483648
        %v805 = vxor.u32 %v791, 2147483648
        %v806 = vxor.u32 %v796, 2147483648
        %v807 = vmul.f32 %v799, 1.442695
        %v808 = vpow.pop %v807
        %v809 = vmul.f32 %v800, 1.442695
        %v810 = vpow.pop %v809
        %v811 = vmul.f32 %v801, 1.442695
        %v812 = vpow.pop %v811
        %v813 = vmul.f32 %v802, 1.442695
        %v814 = vpow.pop %v813
        %v815 = vmul.f32 %v803, 1.442695
        %v816 = vpow.pop %v815
        %v817 = vmul.f32 %v804, 1.442695
        %v818 = vpow.pop %v817
        %v819 = vmul.f32 %v805, 1.442695
        %v820 = vpow.pop %v819
        %v821 = vmul.f32 %v806, 1.442695
        %v822 = vpow.pop %v821
        %v823 = vadd.f32 %v808, 1.0
        %v824 = vadd.f32 %v810, 1.0
        %v825 = vadd.f32 %v812, 1.0
        %v826 = vadd.f32 %v814, 1.0
        %v827 = vadd.f32 %v816, 1.0
        %v828 = vadd.f32 %v818, 1.0
        %v829 = vadd.f32 %v820, 1.0
        %v830 = vadd.f32 %v822, 1.0
        %v831 = vrcp.pop %v823
        %v832 = vmul.f32 1.0, %v831
        %v833 = vrcp.pop %v824
        %v834 = vmul.f32 1.0, %v833
        %v835 = vrcp.pop %v825
        %v836 = vmul.f32 1.0, %v835
        %v837 = vrcp.pop %v826
        %v838 = vmul.f32 1.0, %v837
        %v839 = vrcp.pop %v827
        %v840 = vmul.f32 1.0, %v839
        %v841 = vrcp.pop %v828
        %v842 = vmul.f32 1.0, %v841
        %v843 = vrcp.pop %v829
        %v844 = vmul.f32 1.0, %v843
        %v845 = vrcp.pop %v830
        %v846 = vmul.f32 1.0, %v845
        %v847 = vmul.f32 %v832, %v391
        %v848 = vmul.f32 %v834, %v392
        %v849 = vmul.f32 %v836, %v393
        %v850 = vmul.f32 %v838, %v394
        %851 = vmatprep.subr.mxu0 %v396
        %852 = vmatpush1.msra.mxu0 %v395
        %853 = vmatprep.subr.mxu0 %v398
        %854 = vmatpush1.msra.mxu0 %v397
        %855 = vmatprep.subr.mxu0 %v400
        %856 = vmatpush1.msra.mxu0 %v399
        %857 = vmatprep.subr.mxu0 %v402
        %858 = vmatpush1.msra.mxu0 %v401
        %859 = vmatprep.subr.mxu0 %v404
        %860 = vmatpush1.msra.mxu0 %v403
        %861 = vmatprep.subr.mxu0 %v406
        %862 = vmatpush1.msra.mxu0 %v405
        %863 = vmatprep.subr.mxu0 %v408
        %864 = vmatpush1.msra.mxu0 %v407
        %865 = vmatprep.subr.mxu0 %v410
        %866 = vmatpush1.msra.mxu0 %v409
        %867 = vmatprep.subr.mxu0 %v412
        %868 = vmatpush1.msra.mxu0 %v411
        %869 = vmatprep.subr.mxu0 %v414
        %870 = vmatpush1.msra.mxu0 %v413
        %871 = vmatprep.subr.mxu0 %v416
        %872 = vmatpush1.msra.mxu0 %v415
        %873 = vmatprep.subr.mxu0 %v418
        %874 = vmatpush1.msra.mxu0 %v417
        %875 = vmatprep.subr.mxu0 %v420
        %876 = vmatpush1.msra.mxu0 %v419
        %877 = vmatprep.subr.mxu0 %v422
        %878 = vmatpush1.msra.mxu0 %v421
        %879 = vmatprep.subr.mxu0 %v424
        %880 = vmatpush1.msra.mxu0 %v423
        %881 = vmatprep.subr.mxu0 %v426
        %882 = vmatpush1.msra.mxu0 %v425
        %883 = vmatprep.subr.mxu0 0.0
        %884 = vmatpush1.msra.mxu0 0.0
        %885 = vmatprep.subr.mxu0 0.0
        %886 = vmatpush1.msra.mxu0 0.0
        %887 = vmatprep.subr.mxu0 0.0
        %888 = vmatpush1.msra.mxu0 0.0
        %889 = vmatprep.subr.mxu0 0.0
        %890 = vmatpush1.msra.mxu0 0.0
        %891 = vmatprep.subr.mxu0 0.0
        %892 = vmatpush1.msra.mxu0 0.0
        %893 = vmatprep.subr.mxu0 0.0
        %894 = vmatpush1.msra.mxu0 0.0
        %895 = vmatprep.subr.mxu0 0.0
        %896 = vmatpush1.msra.mxu0 0.0
        %897 = vmatprep.subr.mxu0 0.0
        %898 = vmatpush1.msra.mxu0 0.0
        %899 = vmatprep.subr.mxu0 0.0
        %900 = vmatpush1.msra.mxu0 0.0
        %901 = vmatprep.subr.mxu0 0.0
        %902 = vmatpush1.msra.mxu0 0.0
        %903 = vmatprep.subr.mxu0 0.0
        %904 = vmatpush1.msra.mxu0 0.0
        %905 = vmatprep.subr.mxu0 0.0
        %906 = vmatpush1.msra.mxu0 0.0
        %907 = vmatprep.subr.mxu0 0.0
        %908 = vmatpush1.msra.mxu0 0.0
        %909 = vmatprep.subr.mxu0 0.0
        %910 = vmatpush1.msra.mxu0 0.0
        %911 = vmatprep.subr.mxu0 0.0
        %912 = vmatpush1.msra.mxu0 0.0
        %913 = vmatprep.subr.mxu0 0.0
        %914 = vmatpush1.msra.mxu0 0.0
        %915 = vmatprep.mubr.f32.mxu0 0.0
        %916 = vmatmul.mubr.f32.gmra.mrb[0].mxu0 %v847
        %v917 = vpop.f32.mrb[0].mxu0
        %v918 = vadd.f32 0.0, %v917
        %v919 = vpop.f32.mrb[0].mxu0
        %v920 = vadd.f32 0.0, %v919
        %921 = vmatprep.mubr.f32.mxu0 0.0
        %922 = vmatmul.mubr.f32.gmra.mrb[0].mxu0 %v848
        %v923 = vpop.f32.mrb[0].mxu0
        %v924 = vadd.f32 0.0, %v923
        %v925 = vpop.f32.mrb[0].mxu0
        %v926 = vadd.f32 0.0, %v925
        %927 = vmatprep.mubr.f32.mxu0 0.0
        %928 = vmatmul.mubr.f32.gmra.mrb[0].mxu0 %v849
        %v929 = vpop.f32.mrb[0].mxu0
        %v930 = vadd.f32 0.0, %v929
        %v931 = vpop.f32.mrb[0].mxu0
        %v932 = vadd.f32 0.0, %v931
        %933 = vmatprep.mubr.f32.mxu0 0.0
        %934 = vmatmul.mubr.f32.gmra.mrb[0].mxu0 %v850
        %v935 = vpop.f32.mrb[0].mxu0
        %v936 = vadd.f32 0.0, %v935
        %v937 = vpop.f32.mrb[0].mxu0
        %v938 = vadd.f32 0.0, %v937
        %939 = vdwg.mxu0
        %v940 = vld [vmem:[%s5] sm:$0xff]
        %v941 = vld [vmem:[%s5 + $0x8] sm:$0xff]
        %v942 = vld [vmem:[%s5 + $0x10] sm:$0xff]
        %v943 = vld [vmem:[%s5 + $0x18] sm:$0xff]
        %v944 = vld [vmem:[%s5 + $0x20] sm:$0xff]
        %v945 = vld [vmem:[%s5 + $0x28] sm:$0xff]
        %v946 = vld [vmem:[%s5 + $0x30] sm:$0xff]
        %v947 = vld [vmem:[%s5 + $0x38] sm:$0xff]
        %v948 = vld [vmem:[%s6] sm:$0xff]
        %v949 = vld [vmem:[%s6 + $0x8] sm:$0xff]
        %v950 = vld [vmem:[%s6 + $0x10] sm:$0xff]
        %v951 = vld [vmem:[%s6 + $0x18] sm:$0xff]
        %953 = vset.pattern.permute.xlu0 0
        %954 = vperm.xlu0 %953, %v948
        %v955 = vpop.permute.xlu0 %954
        %958 = vset.pattern.permute.xlu0 0
        %959 = vperm.xlu0 %958, %v949
        %v960 = vpop.permute.xlu0 %959
        %963 = vset.pattern.permute.xlu0 0
        %964 = vperm.xlu0 %963, %v950
        %v965 = vpop.permute.xlu0 %964
        %968 = vset.pattern.permute.xlu0 0
        %969 = vperm.xlu0 %968, %v951
        %v970 = vpop.permute.xlu0 %969
        %v973 = vsel %vm669, %v941, 0
        %v976 = vsel %vm669, %v943, 0
        %v979 = vsel %vm669, %v945, 0
        %v982 = vsel %vm669, %v947, 0
        %984 = vmatprep.subr.mxu0 0.0
        %985 = vmatpush1.msra.mxu0 %v387
        %986 = vmatprep.subr.mxu0 0.0
        %987 = vmatpush1.msra.mxu0 %v388
        %988 = vmatprep.subr.mxu0 0.0
        %989 = vmatpush1.msra.mxu0 %v389
        %990 = vmatprep.subr.mxu0 0.0
        %991 = vmatpush1.msra.mxu0 %v390
        %992 = vmatprep.subr.mxu0 0.0
        %993 = vmatpush1.msra.mxu0 %v847
        %994 = vmatprep.subr.mxu0 0.0
        %995 = vmatpush1.msra.mxu0 %v848
        %996 = vmatprep.subr.mxu0 0.0
        %997 = vmatpush1.msra.mxu0 %v849
        %998 = vmatprep.subr.mxu0 0.0
        %999 = vmatpush1.msra.mxu0 %v850
        %1000 = vmatprep.subr.mxu0 0.0
        %1001 = vmatpush1.msra.mxu0 %v494
        %1002 = vmatprep.subr.mxu0 0.0
        %1003 = vmatpush1.msra.mxu0 %v500
        %1004 = vmatprep.subr.mxu0 0.0
        %1005 = vmatpush1.msra.mxu0 %v506
        %1006 = vmatprep.subr.mxu0 0.0
        %1007 = vmatpush1.msra.mxu0 %v512
        %1008 = vmatprep.subr.mxu0 0.0
        %1009 = vmatpush1.msra.mxu0 %v918
        %1010 = vmatprep.subr.mxu0 0.0
        %1011 = vmatpush1.msra.mxu0 %v924
        %1012 = vmatprep.subr.mxu0 0.0
        %1013 = vmatpush1.msra.mxu0 %v930
        %1014 = vmatprep.subr.mxu0 0.0
        %1015 = vmatpush1.msra.mxu0 %v936
        %1016 = vmatprep.subr.mxu0 0.0
        %1017 = vmatpush1.msra.mxu0 %v496
        %1018 = vmatprep.subr.mxu0 0.0
        %1019 = vmatpush1.msra.mxu0 %v502
        %1020 = vmatprep.subr.mxu0 0.0
        %1021 = vmatpush1.msra.mxu0 %v508
        %1022 = vmatprep.subr.mxu0 0.0
        %1023 = vmatpush1.msra.mxu0 %v514
        %1024 = vmatprep.subr.mxu0 0.0
        %1025 = vmatpush1.msra.mxu0 %v920
        %1026 = vmatprep.subr.mxu0 0.0
        %1027 = vmatpush1.msra.mxu0 %v926
        %1028 = vmatprep.subr.mxu0 0.0
        %1029 = vmatpush1.msra.mxu0 %v932
        %1030 = vmatprep.subr.mxu0 0.0
        %1031 = vmatpush1.msra.mxu0 %v938
        %1032 = vmatprep.subr.mxu0 0.0
        %1033 = vmatpush1.msra.mxu0 0.0
        %1034 = vmatprep.subr.mxu0 0.0
        %1035 = vmatpush1.msra.mxu0 0.0
        %1036 = vmatprep.subr.mxu0 0.0
        %1037 = vmatpush1.msra.mxu0 0.0
        %1038 = vmatprep.subr.mxu0 0.0
        %1039 = vmatpush1.msra.mxu0 0.0
        %1040 = vmatprep.subr.mxu0 0.0
        %1041 = vmatpush1.msra.mxu0 0.0
        %1042 = vmatprep.subr.mxu0 0.0
        %1043 = vmatpush1.msra.mxu0 0.0
        %1044 = vmatprep.subr.mxu0 0.0
        %1045 = vmatpush1.msra.mxu0 0.0
        %1046 = vmatprep.subr.mxu0 0.0
        %1047 = vmatpush1.msra.mxu0 0.0
        %1048 = vmatprep.mubr.f32.mxu0 %v973
        %1049 = vmatmul.mubr.f32.gmra.mrb[0].mxu0 %v940
        %v1050 = vpop.f32.mrb[0].mxu0
        %v1051 = vadd.f32 %v955, %v1050
        %v1052 = vpop.f32.mrb[0].mxu0
        %1053 = vmatprep.mubr.f32.mxu0 %v976
        %1054 = vmatmul.mubr.f32.gmra.mrb[0].mxu0 %v942
        %v1055 = vpop.f32.mrb[0].mxu0
        %v1056 = vadd.f32 %v960, %v1055
        %v1057 = vpop.f32.mrb[0].mxu0
        %1058 = vmatprep.mubr.f32.mxu0 %v979
        %1059 = vmatmul.mubr.f32.gmra.mrb[0].mxu0 %v944
        %v1060 = vpop.f32.mrb[0].mxu0
        %v1061 = vadd.f32 %v965, %v1060
        %v1062 = vpop.f32.mrb[0].mxu0
        %1063 = vmatprep.mubr.f32.mxu0 %v982
        %1064 = vmatmul.mubr.f32.gmra.mrb[0].mxu0 %v946
        %v1065 = vpop.f32.mrb[0].mxu0
        %v1066 = vadd.f32 %v970, %v1065
        %v1067 = vpop.f32.mrb[0].mxu0
        %1068 = vdwg.mxu0
        %v1069 = vtanh.pop %v1051
        %v1070 = vtanh.pop %v1056
        %v1071 = vtanh.pop %v1061
        %v1072 = vtanh.pop %v1066
        %v1073 = vmul.f32 %v840, %v391
        %v1074 = vmul.f32 %v842, %v392
        %v1075 = vmul.f32 %v844, %v393
        %v1076 = vmul.f32 %v846, %v394
        %v1077 = vsub.f32 1.0, %v840
        %v1078 = vsub.f32 1.0, %v842
        %v1079 = vsub.f32 1.0, %v844
        %v1080 = vsub.f32 1.0, %v846
        %v1081 = vmul.f32 %v1077, %v1069
        %v1082 = vmul.f32 %v1078, %v1070
        %v1083 = vmul.f32 %v1079, %v1071
        %v1084 = vmul.f32 %v1080, %v1072
        %v1085 = vadd.f32 %v1073, %v1081
        %v1086 = vadd.f32 %v1074, %v1082
        %v1087 = vadd.f32 %v1075, %v1083
        %v1088 = vadd.f32 %v1076, %v1084
        %1089 = vst [vmem:[%s386] sm:$0xff] %v1085
        %1090 = vst [vmem:[%s386 + $0x8] sm:$0xff] %v1086
        %1091 = vst [vmem:[%s386 + $0x10] sm:$0xff] %v1087
        %1092 = vst [vmem:[%s386 + $0x18] sm:$0xff] %v1088
        %s1093 = sand.u32 %s198, 1
        %s1094 = scalar_lea.sflag [#allocation4], %s1093
        %s1095 = sand.u32 %s198, 1
        %s1096 = smul.addr %s1095, 32
        %s1097 = scalar_lea.vmem [#allocation10], %s1096
        // Predicated region
        $region65: #{tpu_custom_call.1} parent=47 // pred_check
          %p1098 = pneg %p208
        $region66: #{tpu_custom_call.1} parent=47 // pred_check_branch
          %1100 = sbr.rel (%p1098) target = $region68
        $region67: #{tpu_custom_call.1} parent=47 // pred_region
          %s1102 = ssub.s32 512, 512
          %1103 = vsyncadd %s1094, %s1102
          %s1104 = smul.addr %s28, 128
          %s1105 = scalar_lea.hbm %s7, %s1104
          %s1106 = sshll.u32 %s1097, 4
          %s1107 = int_to_ptr.vmem [resolvable:$true] %s1106
          %1112 = dma.vmem_to_hbm [thread:$0]  %s1107, 512, %s1105, %s1094, 128, 512, 8
        $region68: #{tpu_custom_call.1} parent=47 // pred_fallthru
          _
      $region48: #{tpu_custom_call.1} parent=5 // pred_fallthru
        _
      %p1113 = scmp.le.s32.totalorder 2, %s23
      // Predicated region
      $region69: #{tpu_custom_call.1} parent=5 // pred_check
        %p1114 = pneg %p1113
      $region70: #{tpu_custom_call.1} parent=5 // pred_check_branch
        %1116 = sbr.rel (%p1114) target = $region72
      $region71: #{tpu_custom_call.1} parent=5 // pred_region
        %s1117 = ssub.s32 %s23, 2
        // Predicated region
        $region73: #{tpu_custom_call.1} parent=71 // pred_check
          %p1118 = pneg %p214
        $region74: #{tpu_custom_call.1} parent=71 // pred_check_branch
          %1120 = sbr.rel (%p1118) target = $region76
        $region75: #{tpu_custom_call.1} parent=71 // pred_region
          %s1121 = sand.u32 %s199, 1
          %s1122 = scalar_lea.sflag [#allocation4], %s1121
          %s1123 = sand.u32 %s199, 1
          %s1124 = smul.addr %s1123, 32
          %s1125 = scalar_lea.vmem [#allocation10], %s1124
          %1126 = dma.done %s1122, 512
        $region76: #{tpu_custom_call.1} parent=71 // pred_fallthru
          _
      $region72: #{tpu_custom_call.1} parent=5 // pred_fallthru
        _
    $region6: #{tpu_custom_call.1} parent=1 // loop_footer
      %s27 = sadd.s32 1, %s23
    $region7: #{tpu_custom_call.1} parent=1 // loop_footer_branch
      %22 = sbr.rel target = $region3
    $region8: #{tpu_custom_call.1} parent=1 // loop_exit
      _
    %1127 = vsyncpa [#allocation3], 1
    %s1128 = scalar_lea.sflag [#allocation3], 1
    %1129 = vsyncpa %s1128, 1
    %1130 = vsyncpa [#allocation6], 1
    %s1131 = scalar_lea.sflag [#allocation6], 1
    %1132 = vsyncpa %s1131, 1
    %1133 = vsyncpa [#allocation9], 1
    %1134 = vsyncpa [#allocation4], 1
    %s1135 = scalar_lea.sflag [#allocation4], 1
    %1136 = vsyncpa %s1135, 1

</llo_original>
